<compile_context>
chip_gen: v6e
topology: v6e:2x2x1
jax: 0.10.0
libtpu: 0.0.40
codegen_flags: <defaults>
</compile_context>

<pallas_src>
import functools

import jax
import jax.numpy as jnp
import numpy as np
from jax.experimental import pallas as pl
from jax.experimental.pallas import tpu as pltpu


# ----------------------------------------------------------------------------
# Synthetic, deterministic embedding metadata (mirrors what __init__ expects).
# 2 exchange/pair keys x 5 levels x {bid, ask} x {price, volume} = 40 features.
# ----------------------------------------------------------------------------
def build_metadata():
    columns = []
    column_mapping = {}
    for exchange, pair in [("binance", "BTCUSD"), ("coinbase", "ETHUSD")]:
        for feature_type in ("price", "volume"):
            for order_type in ("bid", "ask"):
                for level in range(1, 6):
                    col = f"{exchange}_{pair}_{order_type}_{feature_type}_{level}"
                    columns.append(col)
                    column_mapping[col] = {
                        "exchange": exchange,
                        "trading_pair": pair,
                        "level": level,
                        "order_type": order_type,
                        "feature_type": feature_type,
                    }
    return {"columns": columns, "column_mapping": column_mapping}


# ----------------------------------------------------------------------------
# Index bookkeeping identical to StructuralLoss.__init__
# ----------------------------------------------------------------------------
def build_price_indices(metadata):
    columns = metadata["columns"]
    price_indices = {}
    for i, col in enumerate(columns):
        info = metadata["column_mapping"][col]
        key = f"{info['exchange']}_{info['trading_pair']}"
        if info["feature_type"] == "price":
            price_indices.setdefault(key, {"bid": {}, "ask": {}})
            price_indices[key][info["order_type"]][info["level"]] = i
    return price_indices


def build_constraint_pairs(price_indices):
    """Static list of (a_idx, b_idx) pairs; per-timestep loss term is relu(x[a]-x[b])."""
    pairs = []
    for key, price_cols in price_indices.items():
        bid_cols, ask_cols = price_cols["bid"], price_cols["ask"]
        if not bid_cols or not ask_cols:
            continue
        max_level = min(max(bid_cols.keys()), max(ask_cols.keys()))
        if max_level < 2:
            continue
        for level in range(1, max_level):          # ask ordering: relu(ask_k - ask_{k+1})
            if level in ask_cols and level + 1 in ask_cols:
                pairs.append((ask_cols[level], ask_cols[level + 1]))
        for level in range(1, max_level):          # bid ordering: relu(bid_{k+1} - bid_k)
            if level in bid_cols and level + 1 in bid_cols:
                pairs.append((bid_cols[level + 1], bid_cols[level]))
        if 1 in bid_cols and 1 in ask_cols:        # spread: relu(bid_1 - ask_1)
            pairs.append((bid_cols[1], ask_cols[1]))
    return pairs


# ----------------------------------------------------------------------------
# Pallas kernel: per-tile partial = column-sum(relu(X_tile @ D)) via the MXU.
# ----------------------------------------------------------------------------
def _structural_loss_kernel(x_ref, d_ref, out_ref, *, tile_m, valid_rows_last):
    # x_ref: (tile_m, F) f32 streamed tile; d_ref: (F, C_pad) f32 resident;
    # out_ref: (1, 1, C_pad) f32 per-tile partial.
    if valid_rows_last != tile_m:
        # Ragged last tile: zero the out-of-bounds rows (relu(0)=0) BEFORE the
        # matmul so stale/garbage VMEM (possibly NaN) never enters the sum.
        # Only emitted on the last grid step, so it stays off the hot path.
        @pl.when(pl.program_id(0) == pl.num_programs(0) - 1)
        def _():
            row = jax.lax.broadcasted_iota(jnp.int32, x_ref.shape, 0)
            x_ref[...] = jnp.where(row < valid_rows_last, x_ref[...], 0.0)

    diff = jnp.dot(x_ref[...], d_ref[...], preferred_element_type=jnp.float32)
    hinge = jnp.maximum(diff, 0.0)

    # Row reduction on the MXU (ones-matrix matmul) instead of tm/8 VPU adds:
    # keeps the VALU slot free (matters on v7x) and shrinks the per-step
    # writeback to one lane-dense (1, C_pad) row.  All 8 result rows are
    # identical; keep row 0.
    ones = jnp.ones((8, tile_m), dtype=jnp.float32)
    colsum = jnp.dot(ones, hinge, preferred_element_type=jnp.float32)  # (8, C_pad)
    out_ref[0] = colsum[0:1, :]


def _round_up(v, m):
    return ((v + m - 1) // m) * m


def _pick_tile_rows(m_rows, tile_m_request=None):
    """Generation-aware row-tile size + scoped VMEM limit.

    VMEM accounting uses the *lane-padded* footprint: the (tm, 40) f32 tile is
    stored as (tm, 128) in VMEM -> tm*512 B per buffer, double-buffered, plus
    the (tm, 128) f32 matmul intermediate(s): ~2 KiB per row total.
    """
    vmem_cap = 64 << 20  # conservative default = v7x per-TC physical VMEM
    try:
        info = pltpu.get_tpu_info()
        cap = getattr(info, "vmem_capacity_bytes", None)
        if cap:
            vmem_cap = int(cap)
    except Exception:
        pass

    budget = int(vmem_cap * 0.6)          # headroom for D, outs, compiler scratch
    tm = budget // 2048                   # ~2 KiB of VMEM per row per step
    tm = min(tm, 32768)                   # v5e/v6e sweet spot; v7x is budget-capped
    if tile_m_request is not None:
        tm = min(tm, int(tile_m_request))
    # Keep >= 4 grid steps (>= 2 per TensorCore on v7x, keeps pipelining alive).
    tm = min(tm, max(8, _round_up(pl.cdiv(m_rows, 4), 8)))
    tm = max(8, (tm // 8) * 8)            # multiple of 8 sublanes

    est_step_bytes = tm * 2048 + (4 << 20)
    vmem_limit = max(32 << 20, min(int(vmem_cap * 0.9), est_step_bytes + (8 << 20)))
    return tm, vmem_limit


def structural_loss_pallas(predictions, constraint_pairs, *, tile_m=None):
    """predictions: (batch, seq, features) float32. Returns scalar loss."""
    B, T, F = predictions.shape
    C = len(constraint_pairs)
    if C == 0:
        return jnp.float32(0.0)

    # Constraint axis padded to lane width; zero columns contribute relu(0)=0.
    C_pad = _round_up(max(C, 1), 128)

    M = B * T
    tm, vmem_limit = _pick_tile_rows(M, tile_m)
    num_tiles = pl.cdiv(M, tm)
    valid_rows_last = M - (num_tiles - 1) * tm   # rows of the (possibly ragged) last tile

    # Static difference-selection matrix (F x C_pad); feature axis stays at F.
    d = np.zeros((F, C_pad), dtype=np.float32)
    for c, (a_idx, b_idx) in enumerate(constraint_pairs):
        d[a_idx, c] += 1.0
        d[b_idx, c] -= 1.0
    d = jnp.asarray(d)

    # No jnp.pad: the last tile is masked inside the kernel, so X is read from
    # HBM exactly once (no extra copy pass).
    x = predictions.astype(jnp.float32).reshape(M, F)

    kernel = functools.partial(
        _structural_loss_kernel, tile_m=tm, valid_rows_last=valid_rows_last)

    cost = pl.CostEstimate(
        flops=2 * num_tiles * tm * F * C_pad + 2 * num_tiles * 8 * tm * C_pad,
        transcendentals=0,
        bytes_accessed=M * F * 4 + F * C_pad * 4 + num_tiles * C_pad * 4,
    )

    partials = pl.pallas_call(
        kernel,
        out_shape=jax.ShapeDtypeStruct((num_tiles, 1, C_pad), jnp.float32),
        grid=(num_tiles,),
        in_specs=[
            pl.BlockSpec((tm, F), lambda i: (i, 0)),       # streamed X tile
            pl.BlockSpec((F, C_pad), lambda i: (0, 0)),    # D stays resident
        ],
        out_specs=pl.BlockSpec((1, 1, C_pad), lambda i: (i, 0, 0)),
        compiler_params=pltpu.CompilerParams(
            dimension_semantics=("parallel",),             # megacore-friendly on v7x
            vmem_limit_bytes=vmem_limit,
        ),
        cost_estimate=cost,
    )(x, d)

    # mean over batch for every (t, constraint) term == total_sum / batch
    return jnp.sum(partials) / jnp.float32(B)


# ----------------------------------------------------------------------------
# Pure-numpy reference replicating the PyTorch loops exactly.
# ----------------------------------------------------------------------------
def structural_loss_reference(predictions, price_indices):
    preds = np.asarray(predictions, dtype=np.float32)
    B, T, F = preds.shape
    total = 0.0
    for key, price_cols in price_indices.items():
        bid_cols, ask_cols = price_cols["bid"], price_cols["ask"]
        if not bid_cols or not ask_cols:
            continue
        max_level = min(max(bid_cols.keys()), max(ask_cols.keys()))
        if max_level < 2:
            continue
        for t in range(T):
            for level in range(1, max_level):
                if level in ask_cols and level + 1 in ask_cols:
                    v = np.maximum(preds[:, t, ask_cols[level]] - preds[:, t, ask_cols[level + 1]], 0.0)
                    total += v.mean()
            for level in range(1, max_level):
                if level in bid_cols and level + 1 in bid_cols:
                    v = np.maximum(preds[:, t, bid_cols[level + 1]] - preds[:, t, bid_cols[level]], 0.0)
                    total += v.mean()
            if 1 in bid_cols and 1 in ask_cols:
                v = np.maximum(preds[:, t, bid_cols[1]] - preds[:, t, ask_cols[1]], 0.0)
                total += v.mean()
    return np.float32(total)


if __name__ == "__main__":
    metadata = build_metadata()
    price_indices = build_price_indices(metadata)
    constraint_pairs = build_constraint_pairs(price_indices)
    F = len(metadata["columns"])  # 40 features

    key = jax.random.PRNGKey(0)
    k1, k2 = jax.random.split(key)

    # Case 1: (batch, seq) = (2, 8) -> M = 16 rows, evenly tiled (no mask path).
    preds1 = jax.random.normal(k1, (2, 8, F), dtype=jnp.float32)
    loss1 = jax.block_until_ready(structural_loss_pallas(preds1, constraint_pairs))
    ref1 = structural_loss_reference(np.asarray(preds1), price_indices)
    assert np.allclose(np.float32(loss1), ref1, rtol=1e-5, atol=1e-5), (float(loss1), float(ref1))

    # Case 2: (batch, seq) = (3, 7) -> M = 21 rows, exercises the ragged-tile mask.
    preds2 = jax.random.normal(k2, (3, 7, F), dtype=jnp.float32)
    loss2 = jax.block_until_ready(structural_loss_pallas(preds2, constraint_pairs))
    ref2 = structural_loss_reference(np.asarray(preds2), price_indices)
    assert np.allclose(np.float32(loss2), ref2, rtol=1e-5, atol=1e-5), (float(loss2), float(ref2))

    print("KERNEL_OK")
</pallas_src>

<mosaic_0001>
module attributes {stable_mosaic.version = 11 : i64} {
  func.func @_structural_loss_kernel(%arg0: i32, %arg1: memref<8x40xf32, #tpu.memory_space<vmem>>, %arg2: memref<40x128xf32, #tpu.memory_space<vmem>>, %arg3: memref<1x1x128xf32, #tpu.memory_space<vmem>>) attributes {dimension_semantics = [#tpu.dimension_semantics<parallel>], iteration_bounds = array<i64: 2>, scalar_prefetch = 0 : i64, scratch_operands = 0 : i64, tpu.core_type = #tpu.core_type<tc>, window_params = [{transform_indices = @transform_0, window_bounds = array<i64: 8, 40>}, {pipeline_mode = #tpu.pipeline_mode<synchronous>, transform_indices = @transform_1, window_bounds = array<i64: 40, 128>}, {transform_indices = @transform_2, window_bounds = array<i64: 1, 1, 128>}]} {
    %c0 = arith.constant 0 : index
    %c0_0 = arith.constant 0 : index
    %0 = vector.load %arg1[%c0, %c0_0] : memref<8x40xf32, #tpu.memory_space<vmem>>, vector<8x40xf32>
    %c0_1 = arith.constant 0 : index
    %c0_2 = arith.constant 0 : index
    %1 = vector.load %arg2[%c0_1, %c0_2] : memref<40x128xf32, #tpu.memory_space<vmem>>, vector<40x128xf32>
    %cst = arith.constant dense<0.000000e+00> : vector<8x128xf32>
    %2 = tpu.matmul %0, %1, %cst {dimension_numbers = #tpu.dot_dimension_numbers<[1], [0], [0], [1], [0, 0, 1, 1], [], []>} : vector<8x40xf32>, vector<40x128xf32>, vector<8x128xf32> -> vector<8x128xf32>
    %cst_3 = arith.constant 0.000000e+00 : f32
    %3 = vector.broadcast %cst_3 : f32 to vector<8x128xf32>
    %4 = arith.maximumf %2, %3 : vector<8x128xf32>
    %cst_4 = arith.constant 1.000000e+00 : f32
    %5 = vector.broadcast %cst_4 : f32 to vector<8x8xf32>
    %cst_5 = arith.constant dense<0.000000e+00> : vector<8x128xf32>
    %6 = tpu.matmul %5, %4, %cst_5 {dimension_numbers = #tpu.dot_dimension_numbers<[1], [0], [0], [1], [0, 0, 1, 1], [], []>} : vector<8x8xf32>, vector<8x128xf32>, vector<8x128xf32> -> vector<8x128xf32>
    %7 = vector.extract_strided_slice %6 {offsets = [0, 0], sizes = [1, 128], strides = [1, 1]} : vector<8x128xf32> to vector<1x128xf32>
    %c0_6 = arith.constant 0 : index
    %c0_7 = arith.constant 0 : index
    %c0_8 = arith.constant 0 : index
    %8 = vector.load %arg3[%c0_6, %c0_7, %c0_8] : memref<1x1x128xf32, #tpu.memory_space<vmem>>, vector<1x1x128xf32>
    %9 = vector.shape_cast %8 : vector<1x1x128xf32> to vector<1x128xf32>
    %10 = vector.shape_cast %7 : vector<1x128xf32> to vector<1x1x128xf32>
    tpu.vector_store %arg3[%c0_6, %c0_7, %c0_8], %10 {strides = array<i32>} : memref<1x1x128xf32, #tpu.memory_space<vmem>>, vector<1x1x128xf32>,
    return
  }
  func.func @transform_0(%arg0: i32) -> (i32, i32) {
    %c0_i32 = arith.constant 0 : i32
    %c0_i32_0 = arith.constant 0 : i32
    return %arg0, %c0_i32 : i32, i32
  }
  func.func @transform_1(%arg0: i32) -> (i32, i32) {
    %c0_i32 = arith.constant 0 : i32
    %c0_i32_0 = arith.constant 0 : i32
    %c0_i32_1 = arith.constant 0 : i32
    return %c0_i32, %c0_i32_0 : i32, i32
  }
  func.func @transform_2(%arg0: i32) -> (i32, i32, i32) {
    %c0_i32 = arith.constant 0 : i32
    %c0_i32_0 = arith.constant 0 : i32
    %c0_i32_1 = arith.constant 0 : i32
    return %arg0, %c0_i32, %c0_i32_0 : i32, i32, i32
  }
}

</mosaic_0001>

<llo_original>
// kernel: tpu_custom_call.1
$region0: #{tpu_custom_call.1}
  #allocation0 [shape = 'u32[]', space=smem, size = 0x4, offset = 0x4, fixed_abs, tag = 'smem constant byte address 0x4 - core index']
  #allocation1 [shape = 'u32[144,128]{1,0:T(1,128)}', space=vmem, size = 0x12000, scoped, tag = 'internal scratch']
  %s0 = inlined_call_operand.hbm [shape: f32[16,40], index: 0, kind: input, shape index: {}]
  %s1 = inlined_call_operand.hbm [shape: f32[40,128], index: 1, kind: input, shape index: {}]
  %s2 = inlined_call_operand.hbm [shape: f32[2,1,128], index: 2, kind: output, shape index: {}]
  %s3 = sld [smem:[#allocation0]]
  $region49: #{tpu_custom_call.1} parent=0
    _
  %s5 = ssub.s32 1, %s3
  %s6 = scalar_select 0, %s5, %s3
  $region1: #{tpu_custom_call.1} parent=0
    #allocation2 [shape = 'u8[8192]{0}', space=vmem, size = 0x2000, scoped, tag = 'input window, operand 0']
    #allocation3 [shape = 's32[2]{0}', space=sflag, size = 0x8, scoped, tag = 'scoped memory for tpu_custom_call.1']
    #allocation4 [shape = 's32[2]{0}', space=sflag, size = 0x8, scoped, tag = 'scoped memory for tpu_custom_call.1']
    #allocation5 [shape = 'u8[20480]{0}', space=vmem, size = 0x5000, scoped, tag = 'input window, operand 1, single buffered']
    #allocation6 [shape = 's32[1]{0}', space=sflag, size = 0x4, scoped, tag = 'scoped memory for tpu_custom_call.1']
    #allocation7 [shape = 'u8[1024]{0}', space=vmem, size = 0x400, scoped, tag = 'output window, operand 0']
    %7 = vsyncpa [#allocation3], 0
    %s8 = scalar_lea.sflag [#allocation3], 1
    %9 = vsyncpa %s8, 0
    %10 = vsyncpa [#allocation6], 0
    %11 = vsyncpa [#allocation4], 0
    %s12 = scalar_lea.sflag [#allocation4], 1
    %13 = vsyncpa %s12, 0
    loop: start=0, step=1, limit=4
    $region2: #{tpu_custom_call.1} parent=1 // loop_pre_header
      _
    $region3: #{tpu_custom_call.1} parent=1 // loop_header
      %s15 = sphi 0, %s19
      %p16 = scmp.ge.s32.totalorder %s15, 4
      %s25 = sphi 0, %s27
      %s28 = sphi 0, %s25
      %s29 = sphi 0, %s28
      %s45 = sphi 0, %s29
      %s49 = sphi 0, %s49
      %s51 = sphi 0, %s49
      %s52 = sphi 0, %s51
      %s66 = sphi 0, %s52
      %s72 = sphi 0, %s74
      %s75 = sphi 0, %s72
      %s76 = sphi 0, %s75
      %s92 = sphi 0, %s76
    $region4: #{tpu_custom_call.1} parent=1 // loop_header_branch
      %18 = sbr.rel (%p16) target = $region8
    $region5: #{tpu_custom_call.1} parent=1 // loop_body
      %s20 = ssub.s32 %s15, 1
      %s21 = ssub.s32 %s15, 2
      %s22 = sadd.s32 %s15, 1
      %s23 = ssub.s32 %s15, %s22
      %p24 = scmp.eq.s32.totalorder %s23, 0
      %s26 = sadd.s32 %s25, 1
      %s27 = scalar_select %p24, %s25, %s26
      %p30 = pneg %p24
      %p31 = scmp.eq.s32.totalorder %s15, 1
      %p32 = por %p30, %p31
      %p33 = scmp.ne.s32.totalorder %s25, %s28
      %p34 = scmp.eq.s32.totalorder %s15, 0
      %p35 = por %p33, %p34
      %p36 = scmp.ne.s32.totalorder %s25, %s28
      %p37 = scmp.eq.s32.totalorder %s20, 1
      %p38 = por %p36, %p37
      %p39 = scmp.ne.s32.totalorder %s28, %s29
      %p40 = scmp.eq.s32.totalorder %s20, 0
      %p41 = por %p39, %p40
      %p42 = scmp.ne.s32.totalorder %s28, %s29
      %p43 = scmp.eq.s32.totalorder %s21, 1
      %p44 = por %p42, %p43
      %p46 = scmp.ne.s32.totalorder %s29, %s45
      %p47 = scmp.eq.s32.totalorder %s21, 0
      %p48 = por %p46, %p47
      %s50 = sadd.s32 %s49, 1
      %p53 = scmp.eq.s32.totalorder %s15, 1
      %p54 = scmp.ne.s32.totalorder %s49, %s51
      %p55 = scmp.eq.s32.totalorder %s15, 0
      %p56 = por %p54, %p55
      %p57 = scmp.ne.s32.totalorder %s49, %s51
      %p58 = scmp.eq.s32.totalorder %s20, 1
      %p59 = por %p57, %p58
      %p60 = scmp.ne.s32.totalorder %s51, %s52
      %p61 = scmp.eq.s32.totalorder %s20, 0
      %p62 = por %p60, %p61
      %p63 = scmp.ne.s32.totalorder %s51, %s52
      %p64 = scmp.eq.s32.totalorder %s21, 1
      %p65 = por %p63, %p64
      %p67 = scmp.ne.s32.totalorder %s52, %s66
      %p68 = scmp.eq.s32.totalorder %s21, 0
      %p69 = por %p67, %p68
      %s70 = ssub.s32 %s15, %s22
      %p71 = scmp.eq.s32.totalorder %s70, 0
      %s73 = sadd.s32 %s72, 1
      %s74 = scalar_select %p71, %s72, %s73
      %p77 = pneg %p71
      %p78 = scmp.eq.s32.totalorder %s15, 1
      %p79 = por %p77, %p78
      %p80 = scmp.ne.s32.totalorder %s72, %s75
      %p81 = scmp.eq.s32.totalorder %s15, 0
      %p82 = por %p80, %p81
      %p83 = scmp.ne.s32.totalorder %s72, %s75
      %p84 = scmp.eq.s32.totalorder %s20, 1
      %p85 = por %p83, %p84
      %p86 = scmp.ne.s32.totalorder %s75, %s76
      %p87 = scmp.eq.s32.totalorder %s20, 0
      %p88 = por %p86, %p87
      %p89 = scmp.ne.s32.totalorder %s75, %s76
      %p90 = scmp.eq.s32.totalorder %s21, 1
      %p91 = por %p89, %p90
      %p93 = scmp.ne.s32.totalorder %s76, %s92
      %p94 = scmp.eq.s32.totalorder %s21, 0
      %p95 = por %p93, %p94
      %p96 = scmp.le.s32.totalorder 1, %s15
      %p97 = scmp.lt.s32.totalorder %s15, 3
      %p98 = pnand %p96, %p97
      %p99 = pneg %p98
      // Predicated region
      $region9: #{tpu_custom_call.1} parent=5 // pred_check
        _
      $region10: #{tpu_custom_call.1} parent=5 // pred_check_branch
        %101 = sbr.rel (%p98) target = $region12
      $region11: #{tpu_custom_call.1} parent=5 // pred_region
        %s102 = ssub.s32 %s15, 1
        // Predicated region
        $region13: #{tpu_custom_call.1} parent=11 // pred_check
          %p103 = pneg %p62
        $region14: #{tpu_custom_call.1} parent=11 // pred_check_branch
          %105 = sbr.rel (%p103) target = $region16
        $region15: #{tpu_custom_call.1} parent=11 // pred_region
          %s107 = ssub.s32 640, 640
          %108 = vsyncadd [#allocation6], %s107
          %s109 = sshll.u32 [#allocation5], 4
          %s110 = int_to_ptr.vmem [resolvable:$true] %s109
          %115 = dma.hbm_to_vmem [thread:$0]  %s1, 640, %s110, [#allocation6], 128, 128, 8
        $region16: #{tpu_custom_call.1} parent=11 // pred_fallthru
          _
      $region12: #{tpu_custom_call.1} parent=5 // pred_fallthru
        _
      %p116 = scmp.lt.s32.totalorder %s15, 2
      // Predicated region
      $region17: #{tpu_custom_call.1} parent=5 // pred_check
        %p117 = pneg %p116
      $region18: #{tpu_custom_call.1} parent=5 // pred_check_branch
        %119 = sbr.rel (%p117) target = $region20
      $region19: #{tpu_custom_call.1} parent=5 // pred_region
        // Predicated region
        $region21: #{tpu_custom_call.1} parent=19 // pred_check
          %p120 = pneg %p35
        $region22: #{tpu_custom_call.1} parent=19 // pred_check_branch
          %122 = sbr.rel (%p120) target = $region24
        $region23: #{tpu_custom_call.1} parent=19 // pred_region
          %s123 = sand.u32 %s25, 1
          %s124 = scalar_lea.sflag [#allocation3], %s123
          %s125 = sand.u32 %s25, 1
          %s126 = smul.addr %s125, 8
          %s127 = scalar_lea.vmem [#allocation2], %s126
          %s129 = ssub.s32 128, 128
          %130 = vsyncadd %s124, %s129
          %s131 = smul.addr %s15, 128
          %s132 = scalar_lea.hbm %s0, %s131
          %s134 = sshll.u32 %s127, 4
          %s135 = int_to_ptr.vmem [resolvable:$true] %s134
          %137 = dma.hbm_to_vmem [thread:$0]  %s132, 128, %s135, %s124
        $region24: #{tpu_custom_call.1} parent=19 // pred_fallthru
          _
      $region20: #{tpu_custom_call.1} parent=5 // pred_fallthru
        _
      %p138 = scmp.le.s32.totalorder 1, %s15
      %p139 = scmp.lt.s32.totalorder %s15, 3
      %p140 = pnand %p138, %p139
      %p141 = pneg %p140
      // Predicated region
      $region25: #{tpu_custom_call.1} parent=5 // pred_check
        _
      $region26: #{tpu_custom_call.1} parent=5 // pred_check_branch
        %143 = sbr.rel (%p140) target = $region28
      $region27: #{tpu_custom_call.1} parent=5 // pred_region
        %s144 = ssub.s32 %s15, 1
        %s145 = sand.u32 %s28, 1
        %s146 = scalar_lea.sflag [#allocation3], %s145
        %s147 = sand.u32 %s28, 1
        %s148 = smul.addr %s147, 8
        %s149 = scalar_lea.vmem [#allocation2], %s148
        // Predicated region
        $region29: #{tpu_custom_call.1} parent=27 // pred_check
          %p150 = pneg %p41
        $region30: #{tpu_custom_call.1} parent=27 // pred_check_branch
          %152 = sbr.rel (%p150) target = $region32
        $region31: #{tpu_custom_call.1} parent=27 // pred_region
          %153 = dma.done %s146, 128
        $region32: #{tpu_custom_call.1} parent=27 // pred_fallthru
          _
        // Predicated region
        $region33: #{tpu_custom_call.1} parent=27 // pred_check
          %p154 = pneg %p62
        $region34: #{tpu_custom_call.1} parent=27 // pred_check_branch
          %156 = sbr.rel (%p154) target = $region36
        $region35: #{tpu_custom_call.1} parent=27 // pred_region
          %157 = dma.done [#allocation6], 640
        $region36: #{tpu_custom_call.1} parent=27 // pred_fallthru
          _
        %s158 = sand.u32 %s28, 1
        %s159 = scalar_lea.sflag [#allocation3], %s158
        %s160 = sand.u32 %s28, 1
        %s161 = smul.addr %s160, 8
        %s162 = scalar_lea.vmem [#allocation2], %s161
        %p163 = pneg %p41
        %p164 = pneg %p38
        %p165 = pneg %p62
        %p166 = pneg %p59
        %p167 = pneg %p88
        %p168 = pneg %p85
        %s169 = sand.u32 %s75, 1
        %s170 = scalar_lea.sflag [#allocation4], %s169
        %s171 = sand.u32 %s75, 1
        %s172 = scalar_lea.vmem [#allocation7], %s171
        %v173 = vld [vmem:[%s149] sm:$0xff]
        %v174 = vld [vmem:[#allocation5] sm:$0xff]
        %v175 = vld [vmem:[#allocation5 + $0x8] sm:$0xff]
        %v176 = vld [vmem:[#allocation5 + $0x10] sm:$0xff]
        %v177 = vld [vmem:[#allocation5 + $0x18] sm:$0xff]
        %v178 = vld [vmem:[#allocation5 + $0x20] sm:$0xff]
        %vm179 = vcmask 326656
        %v181 = vsel %vm179, %v173, 0
        %183 = vmatprep.subr.mxu0 0.0
        %184 = vmatpush1.msra.mxu0 0.0
        %185 = vmatprep.subr.mxu0 0.0
        %186 = vmatpush1.msra.mxu0 0.0
        %187 = vmatprep.subr.mxu0 0.0
        %188 = vmatpush1.msra.mxu0 0.0
        %189 = vmatprep.subr.mxu0 0.0
        %190 = vmatpush1.msra.mxu0 0.0
        %191 = vmatprep.subr.mxu0 0.0
        %192 = vmatpush1.msra.mxu0 0.0
        %193 = vmatprep.subr.mxu0 0.0
        %194 = vmatpush1.msra.mxu0 0.0
        %195 = vmatprep.subr.mxu0 0.0
        %196 = vmatpush1.msra.mxu0 0.0
        %197 = vmatprep.subr.mxu0 0.0
        %198 = vmatpush1.msra.mxu0 0.0
        %199 = vmatprep.subr.mxu0 0.0
        %200 = vmatpush1.msra.mxu0 0.0
        %201 = vmatprep.subr.mxu0 0.0
        %202 = vmatpush1.msra.mxu0 0.0
        %203 = vmatprep.subr.mxu0 0.0
        %204 = vmatpush1.msra.mxu0 0.0
        %205 = vmatprep.subr.mxu0 0.0
        %206 = vmatpush1.msra.mxu0 %v178
        %207 = vmatprep.subr.mxu0 0.0
        %208 = vmatpush1.msra.mxu0 %v177
        %209 = vmatprep.subr.mxu0 0.0
        %210 = vmatpush1.msra.mxu0 %v176
        %211 = vmatprep.subr.mxu0 0.0
        %212 = vmatpush1.msra.mxu0 %v175
        %213 = vmatprep.subr.mxu0 0.0
        %214 = vmatpush1.msra.mxu0 %v174
        %215 = vmatprep.subr.mxu0 0.0
        %216 = vmatpush2.msra.mxu0 0.0
        %217 = vmatprep.subr.mxu0 0.0
        %218 = vmatpush2.msra.mxu0 0.0
        %219 = vmatprep.subr.mxu0 0.0
        %220 = vmatpush2.msra.mxu0 0.0
        %221 = vmatprep.subr.mxu0 0.0
        %222 = vmatpush2.msra.mxu0 0.0
        %223 = vmatprep.subr.mxu0 0.0
        %224 = vmatpush2.msra.mxu0 0.0
        %225 = vmatprep.subr.mxu0 0.0
        %226 = vmatpush2.msra.mxu0 0.0
        %227 = vmatprep.subr.mxu0 0.0
        %228 = vmatpush2.msra.mxu0 0.0
        %229 = vmatprep.subr.mxu0 0.0
        %230 = vmatpush2.msra.mxu0 0.0
        %231 = vmatprep.subr.mxu0 0.0
        %232 = vmatpush2.msra.mxu0 0.0
        %233 = vmatprep.subr.mxu0 0.0
        %234 = vmatpush2.msra.mxu0 0.0
        %235 = vmatprep.subr.mxu0 0.0
        %236 = vmatpush2.msra.mxu0 0.0
        %237 = vmatprep.subr.mxu0 0.0
        %238 = vmatpush2.msra.mxu0 0.0
        %239 = vmatprep.subr.mxu0 0.0
        %240 = vmatpush2.msra.mxu0 0.0
        %241 = vmatprep.subr.mxu0 0.0
        %242 = vmatpush2.msra.mxu0 0.0
        %243 = vmatprep.subr.mxu0 0.0
        %244 = vmatpush2.msra.mxu0 0.0
        %245 = vmatprep.subr.mxu0 0.0
        %246 = vmatpush2.msra.mxu0 0.0
        %247 = vmatprep.mubr.f32.mxu0 0.0
        %248 = vmatmul.mubr.f32.gmra.mxu0 %v181
        %v249 = vpop.f32.mrf.mxu0
        %v250 = vadd.f32 0.0, %v249
        %v251 = vpop.f32.mrf.mxu0
        %252 = vdwg.mxu0
        %v253 = vmax.f32 %v250, 0.0
        %vm254 = vcmask 64512
        %v256 = vsel %vm254, 1.0, 0
        %258 = vmatprep.subr.mxu0 0.0
        %259 = vmatpush1.msra.mxu0 0.0
        %260 = vmatprep.subr.mxu0 0.0
        %261 = vmatpush1.msra.mxu0 0.0
        %262 = vmatprep.subr.mxu0 0.0
        %263 = vmatpush1.msra.mxu0 0.0
        %264 = vmatprep.subr.mxu0 0.0
        %265 = vmatpush1.msra.mxu0 0.0
        %266 = vmatprep.subr.mxu0 0.0
        %267 = vmatpush1.msra.mxu0 0.0
        %268 = vmatprep.subr.mxu0 0.0
        %269 = vmatpush1.msra.mxu0 0.0
        %270 = vmatprep.subr.mxu0 0.0
        %271 = vmatpush1.msra.mxu0 0.0
        %272 = vmatprep.subr.mxu0 0.0
        %273 = vmatpush1.msra.mxu0 0.0
        %274 = vmatprep.subr.mxu0 0.0
        %275 = vmatpush1.msra.mxu0 0.0
        %276 = vmatprep.subr.mxu0 0.0
        %277 = vmatpush1.msra.mxu0 0.0
        %278 = vmatprep.subr.mxu0 0.0
        %279 = vmatpush1.msra.mxu0 0.0
        %280 = vmatprep.subr.mxu0 0.0
        %281 = vmatpush1.msra.mxu0 0.0
        %282 = vmatprep.subr.mxu0 0.0
        %283 = vmatpush1.msra.mxu0 0.0
        %284 = vmatprep.subr.mxu0 0.0
        %285 = vmatpush1.msra.mxu0 0.0
        %286 = vmatprep.subr.mxu0 0.0
        %287 = vmatpush1.msra.mxu0 0.0
        %288 = vmatprep.subr.mxu0 0.0
        %289 = vmatpush1.msra.mxu0 %v253
        %290 = vmatprep.subr.mxu0 0.0
        %291 = vmatpush2.msra.mxu0 0.0
        %292 = vmatprep.subr.mxu0 0.0
        %293 = vmatpush2.msra.mxu0 0.0
        %294 = vmatprep.subr.mxu0 0.0
        %295 = vmatpush2.msra.mxu0 0.0
        %296 = vmatprep.subr.mxu0 0.0
        %297 = vmatpush2.msra.mxu0 0.0
        %298 = vmatprep.subr.mxu0 0.0
        %299 = vmatpush2.msra.mxu0 0.0
        %300 = vmatprep.subr.mxu0 0.0
        %301 = vmatpush2.msra.mxu0 0.0
        %302 = vmatprep.subr.mxu0 0.0
        %303 = vmatpush2.msra.mxu0 0.0
        %304 = vmatprep.subr.mxu0 0.0
        %305 = vmatpush2.msra.mxu0 0.0
        %306 = vmatprep.subr.mxu0 0.0
        %307 = vmatpush2.msra.mxu0 0.0
        %308 = vmatprep.subr.mxu0 0.0
        %309 = vmatpush2.msra.mxu0 0.0
        %310 = vmatprep.subr.mxu0 0.0
        %311 = vmatpush2.msra.mxu0 0.0
        %312 = vmatprep.subr.mxu0 0.0
        %313 = vmatpush2.msra.mxu0 0.0
        %314 = vmatprep.subr.mxu0 0.0
        %315 = vmatpush2.msra.mxu0 0.0
        %316 = vmatprep.subr.mxu0 0.0
        %317 = vmatpush2.msra.mxu0 0.0
        %318 = vmatprep.subr.mxu0 0.0
        %319 = vmatpush2.msra.mxu0 0.0
        %320 = vmatprep.subr.mxu0 0.0
        %321 = vmatpush2.msra.mxu0 0.0
        %322 = vmatprep.mubr.f32.mxu0 0.0
        %323 = vmatmul.mubr.f32.gmra.mxu0 %v256
        %v324 = vpop.f32.mrf.mxu0
        %v325 = vadd.f32 0.0, %v324
        %v326 = vpop.f32.mrf.mxu0
        %327 = vdwg.mxu0
        %328 = vst [vmem:[%s172] sm:$0x1] %v325
        %s329 = sand.u32 %s75, 1
        %s330 = scalar_lea.sflag [#allocation4], %s329
        %s331 = sand.u32 %s75, 1
        %s332 = scalar_lea.vmem [#allocation7], %s331
        // Predicated region
        $region37: #{tpu_custom_call.1} parent=27 // pred_check
          %p333 = pneg %p85
        $region38: #{tpu_custom_call.1} parent=27 // pred_check_branch
          %335 = sbr.rel (%p333) target = $region40
        $region39: #{tpu_custom_call.1} parent=27 // pred_region
          %s337 = ssub.s32 16, 16
          %338 = vsyncadd %s330, %s337
          %s339 = smul.addr %s20, 16
          %s340 = scalar_lea.hbm %s2, %s339
          %s342 = sshll.u32 %s332, 4
          %s343 = int_to_ptr.vmem [resolvable:$true] %s342
          %345 = dma.vmem_to_hbm [thread:$0]  %s343, 16, %s340, %s330
        $region40: #{tpu_custom_call.1} parent=27 // pred_fallthru
          _
      $region28: #{tpu_custom_call.1} parent=5 // pred_fallthru
        _
      %p346 = scmp.le.s32.totalorder 2, %s15
      // Predicated region
      $region41: #{tpu_custom_call.1} parent=5 // pred_check
        %p347 = pneg %p346
      $region42: #{tpu_custom_call.1} parent=5 // pred_check_branch
        %349 = sbr.rel (%p347) target = $region44
      $region43: #{tpu_custom_call.1} parent=5 // pred_region
        %s350 = ssub.s32 %s15, 2
        // Predicated region
        $region45: #{tpu_custom_call.1} parent=43 // pred_check
          %p351 = pneg %p91
        $region46: #{tpu_custom_call.1} parent=43 // pred_check_branch
          %353 = sbr.rel (%p351) target = $region48
        $region47: #{tpu_custom_call.1} parent=43 // pred_region
          %s354 = sand.u32 %s76, 1
          %s355 = scalar_lea.sflag [#allocation4], %s354
          %s356 = sand.u32 %s76, 1
          %s357 = scalar_lea.vmem [#allocation7], %s356
          %358 = dma.done %s355, 16
        $region48: #{tpu_custom_call.1} parent=43 // pred_fallthru
          _
      $region44: #{tpu_custom_call.1} parent=5 // pred_fallthru
        _
    $region6: #{tpu_custom_call.1} parent=1 // loop_footer
      %s19 = sadd.s32 1, %s15
    $region7: #{tpu_custom_call.1} parent=1 // loop_footer_branch
      %14 = sbr.rel target = $region3
    $region8: #{tpu_custom_call.1} parent=1 // loop_exit
      _
    %359 = vsyncpa [#allocation3], 1
    %s360 = scalar_lea.sflag [#allocation3], 1
    %361 = vsyncpa %s360, 1
    %362 = vsyncpa [#allocation6], 1
    %363 = vsyncpa [#allocation4], 1
    %s364 = scalar_lea.sflag [#allocation4], 1
    %365 = vsyncpa %s364, 1

</llo_original>
